<compile_context>
chip_gen: v6e
topology: v6e:2x2x1
jax: 0.10.0
libtpu: 0.0.40
codegen_flags: <defaults>
</compile_context>

<pallas_src>
import functools

import numpy as np

import jax
import jax.numpy as jnp
from jax.experimental import pallas as pl
from jax.experimental.pallas import tpu as pltpu


_MIN_GRID_STEPS = 8          # keep both v7x TensorCores fed when possible
_MIN_TILE_BYTES = 1 << 20    # never shrink the vwm tile below ~1 MiB


@functools.lru_cache(maxsize=None)
def _vmem_budgets():
    """Returns (vmem_limit_bytes, vwm_tile_bytes), generation-aware."""
    cap = None
    try:
        cap = int(getattr(pltpu.get_tpu_info(), "vmem_capacity_bytes", 0)) or None
    except Exception:
        cap = None
    if cap is None:
        cap = 64 * 1024 * 1024            # conservative (v7x-sized) fallback
    vmem_limit = min((cap * 3) // 4, 96 * 1024 * 1024)   # 48 MiB on v7x, 96 MiB on v5e/v6e
    tile_bytes = min(vmem_limit // 6, 16 * 1024 * 1024)  # ~4 live copies + headroom
    return int(vmem_limit), int(tile_bytes)


def _sublane_multiple(dtype):
    # f32 -> 8, bf16 -> 16, int8/fp8 -> 32 (packed sublane multiples).
    return max(8, 32 // jnp.dtype(dtype).itemsize)


def _gates_and_small_outputs(small_ref, vo_ref, mo_ref, ma_ref, wts_ref,
                             out_obj_ref, wts_out_ref):
    """Shared gating math + the two small outputs.  Returns (w, vo) in f32."""
    f32 = jnp.float32
    small = small_ref[...].astype(f32)                 # (TB, 6) packed scalars
    valid_vo = small[:, 0:1]
    valid_mo = small[:, 1:2]
    T1 = small[:, 2:3]
    T2 = small[:, 3:4]
    T3 = small[:, 4:5]
    T4 = small[:, 5:6]

    gate = (T2 + T3) * (1.0 - T4) * valid_vo           # (TB, 1)
    alpha = valid_mo * gate
    beta = (1.0 - valid_mo) * gate

    ma = ma_ref[...].astype(f32)                       # (TB, S)
    wts = wts_ref[...].astype(f32)                     # (TB, S)
    w = alpha * ma + beta * wts                        # (TB, S)

    # Sequential write head: wrap-around shift by +1 slot, blended in FMA form.
    # TODO(synk): switch to pltpu.roll(wts, 1, 1) once the rotation direction is
    # verified on-device; this concat only touches a (TB, S) tile so it is noise.
    shifted = jnp.concatenate([wts[:, -1:], wts[:, :-1]], axis=1)
    wts_out_ref[...] = (wts + beta * (shifted - wts)).astype(wts_out_ref.dtype)

    # Context read vector (output object).
    vo = vo_ref[...].astype(f32)                       # (TB, D)
    mo = mo_ref[...].astype(f32)                       # (TB, D)
    is_visual = (T1 + T3) * valid_vo
    is_mem = (T2 + T3 * (1.0 - valid_vo)) * valid_mo
    out_obj_ref[...] = (is_visual * vo + is_mem * mo).astype(out_obj_ref.dtype)

    return w, vo


def _expand_onehot_exact(x, onehot_ref):
    """x @ onehot for a 0/1 (bf16) matrix, exact to ~2^-26 regardless of MXU
    matmul precision: x (f32) is split into three bf16-exact chunks, each
    bf16 x bf16 matmul is a single exact MXU pass (0/1 entries are bf16-exact)
    accumulated in f32.  The MXU is otherwise idle in this kernel."""
    f32 = jnp.float32
    bf16 = jnp.bfloat16
    oh = onehot_ref[...]
    hi = x.astype(bf16)
    r1 = x - hi.astype(f32)
    mid = r1.astype(bf16)
    lo = (r1 - mid.astype(f32)).astype(bf16)
    out = jnp.dot(hi, oh, preferred_element_type=f32)
    out = out + jnp.dot(mid, oh, preferred_element_type=f32)
    out = out + jnp.dot(lo, oh, preferred_element_type=f32)
    return out


def _memory_update_kernel_3d(small_ref, vo_ref, mo_ref, ma_ref, wts_ref, vwm_ref,
                             out_obj_ref, vwm_out_ref, wts_out_ref,
                             *, compute_dtype):
    """vwm block (TB, S, D) -- used when D is already a multiple of 128 lanes."""
    w, vo = _gates_and_small_outputs(small_ref, vo_ref, mo_ref, ma_ref, wts_ref,
                                     out_obj_ref, wts_out_ref)
    cd = compute_dtype
    vwm = vwm_ref[...].astype(cd)                      # no-op cast when cd == vwm dtype
    w_b = w.astype(cd)[:, :, None]                     # (TB, S, 1)
    vo_b = vo.astype(cd)[:, None, :]                   # (TB, 1, D)
    # vwm*(1-w) + w*vo  ==  vwm + w*(vo - vwm)
    vwm_out_ref[...] = (vwm + w_b * (vo_b - vwm)).astype(vwm_out_ref.dtype)


def _memory_update_kernel_flat(small_ref, vo_ref, mo_ref, ma_ref, wts_ref, vwm_ref,
                               ew_ref, evo_ref,
                               out_obj_ref, vwm_out_ref, wts_out_ref,
                               *, compute_dtype):
    """vwm block (TB, S*D) -- lane-dense path for 128-unaligned D.

    The per-slot / per-feature broadcasts onto the S*D lane axis go through the
    idle MXU via tiny 0/1 one-hot expansion matrices (instead of O(S+D) VALU
    select chains), keeping this path HBM-bound.
    """
    w, vo = _gates_and_small_outputs(small_ref, vo_ref, mo_ref, ma_ref, wts_ref,
                                     out_obj_ref, wts_out_ref)
    w_flat = _expand_onehot_exact(w, ew_ref)           # (TB, S*D): w[b, l // D]
    vo_flat = _expand_onehot_exact(vo, evo_ref)        # (TB, S*D): vo[b, l % D]
    cd = compute_dtype
    vwm = vwm_ref[...].astype(cd)                      # (TB, S*D)
    # vwm*(1-w) + w*vo  ==  vwm + w*(vo - vwm)
    vwm_out_ref[...] = (vwm + w_flat.astype(cd) * (vo_flat.astype(cd) - vwm)
                        ).astype(vwm_out_ref.dtype)


def memory_update(valid_vo, valid_mo, vo, mo, ma, vwm,
                  temporal_class_weights, wt_sequential, *, batch_tile=None):
    """Forward pass of MemoryUpdateUnit.

    Returns (output_object, new_visual_working_memory, new_wt_sequential).
    """
    B, S, D = vwm.shape
    itemsize = jnp.dtype(vwm.dtype).itemsize
    flatten = (D % 128) != 0              # lane-dense (B, S*D) view for 128-unaligned D
    sublane = _sublane_multiple(vwm.dtype)
    vmem_limit, tile_bytes = _vmem_budgets()

    # Pack the tiny per-batch scalars into one stream (fewer DMAs per step).
    small = jnp.concatenate(
        [jnp.reshape(valid_vo, (B, 1)).astype(jnp.float32),
         jnp.reshape(valid_mo, (B, 1)).astype(jnp.float32),
         jnp.reshape(temporal_class_weights, (B, 4)).astype(jnp.float32)],
        axis=1)                                          # (B, 6)

    vwm_in = vwm.reshape(B, S * D) if flatten else vwm   # free metadata reshape

    # Batch tile: target `tile_bytes` of vwm per grid step, rounded to the
    # dtype-dependent sublane multiple; then prefer more grid steps (megacore
    # balance on v7x) while tiles stay >= _MIN_TILE_BYTES.
    row_bytes = S * D * itemsize
    if batch_tile is None:
        rows = max(1, tile_bytes // max(1, row_bytes))
        tb = B if rows >= B else max(sublane, (rows // sublane) * sublane)
        while (pl.cdiv(B, tb) < _MIN_GRID_STEPS and tb > sublane
               and (tb // 2) * row_bytes >= _MIN_TILE_BYTES):
            tb = max(sublane, ((tb // 2) // sublane) * sublane)
    else:
        tb = max(1, min(int(batch_tile), B))
    tb = min(tb, B)
    if tb < B:
        tb = max(sublane, (tb // sublane) * sublane)
    grid = (pl.cdiv(B, tb),)

    # ~4 live copies of the vwm tile (double-buffered in + out) + slack.
    # TODO(synk): for pathologically large S*D rows a second grid axis chunking
    # the slot/feature dimension would be needed; not implemented here.
    est_live = 4 * tb * row_bytes + (2 << 20)
    if est_live > vmem_limit:
        vmem_limit = est_live

    bmap = lambda i: (i, 0)
    # bf16 vwm: keep the big-tile FMA in bf16 (native bf16 VPU on v6e/v7x);
    # gates and small outputs stay f32.  (On v5e f32 compute would be preferred.)
    compute_dtype = jnp.bfloat16 if vwm.dtype == jnp.bfloat16 else jnp.float32

    extra_inputs = []
    extra_specs = []
    if flatten:
        vwm_spec = pl.BlockSpec((tb, S * D), bmap)
        # 0/1 one-hot expansion matrices (bf16-exact), resident across the grid.
        lane = np.arange(S * D)
        ew = jnp.asarray((lane[None, :] // D == np.arange(S)[:, None])
                         .astype(np.float32), dtype=jnp.bfloat16)    # (S, S*D)
        evo = jnp.asarray((lane[None, :] % D == np.arange(D)[:, None])
                          .astype(np.float32), dtype=jnp.bfloat16)   # (D, S*D)
        extra_inputs = [ew, evo]
        extra_specs = [pl.BlockSpec((S, S * D), lambda i: (0, 0)),
                       pl.BlockSpec((D, S * D), lambda i: (0, 0))]
        kernel = functools.partial(_memory_update_kernel_flat,
                                   compute_dtype=compute_dtype)
    else:
        vwm_spec = pl.BlockSpec((tb, S, D), lambda i: (i, 0, 0))
        kernel = functools.partial(_memory_update_kernel_3d,
                                   compute_dtype=compute_dtype)
        # TODO(synk): for bf16 vwm a lane-dense (tb, S*D) layout would pack the
        # sublane axis with tb instead of S; needs a Mosaic-friendly relayout.

    in_specs = [
        pl.BlockSpec((tb, 6), bmap),          # packed valid_vo/valid_mo/T1..T4
        pl.BlockSpec((tb, D), bmap),          # vo
        pl.BlockSpec((tb, D), bmap),          # mo
        pl.BlockSpec((tb, S), bmap),          # ma
        pl.BlockSpec((tb, S), bmap),          # wt_sequential (aliased -> out 2)
        vwm_spec,                             # vwm (dominant HBM stream)
    ] + extra_specs
    out_specs = (
        pl.BlockSpec((tb, D), bmap),          # output_object
        vwm_spec,                             # new vwm (aliases input 5)
        pl.BlockSpec((tb, S), bmap),          # new wt_sequential (aliases input 4)
    )
    out_shapes = (
        jax.ShapeDtypeStruct((B, D), vo.dtype),
        jax.ShapeDtypeStruct(vwm_in.shape, vwm.dtype),
        jax.ShapeDtypeStruct((B, S), wt_sequential.dtype),
    )

    vwm_bytes = B * S * D * itemsize
    small_bytes = 4 * B * (2 * D + 2 * S + 6) + B * (D + S) * itemsize
    cost = pl.CostEstimate(flops=3 * B * S * D + 12 * B * (S + D),
                           transcendentals=0,
                           bytes_accessed=2 * vwm_bytes + small_bytes)

    out_obj, new_vwm, new_wts = pl.pallas_call(
        kernel,
        out_shape=out_shapes,
        grid=grid,
        in_specs=in_specs,
        out_specs=out_specs,
        input_output_aliases={5: 1, 4: 2},    # in-place vwm / wt_sequential
        compiler_params=pltpu.CompilerParams(
            dimension_semantics=("parallel",),
            vmem_limit_bytes=int(vmem_limit)),
        cost_estimate=cost,
    )(small, vo, mo, ma, wt_sequential, vwm_in, *extra_inputs)

    if flatten:
        new_vwm = new_vwm.reshape(B, S, D)
    return out_obj, new_vwm, new_wts


def memory_update_ref(valid_vo, valid_mo, vo, mo, ma, vwm, tcw, wts):
    """Pure-JAX reference mirroring the PyTorch forward pass."""
    T1, T2, T3, T4 = tcw[:, 0], tcw[:, 1], tcw[:, 2], tcw[:, 3]
    alpha = (valid_mo * valid_vo * (T2 + T3) * (1 - T4))[..., None]
    beta = ((1 - valid_mo) * valid_vo * (T2 + T3) * (1 - T4))[..., None]
    w = alpha * ma + beta * wts
    added = w[..., None] * vo[:, None, :]
    erased = w[..., None] * jnp.ones((vo.shape[0], 1, vo.shape[1]), vo.dtype)
    new_vwm = vwm * (1.0 - erased) + added
    new_wts = jnp.roll(wts, 1, axis=-1) * beta + wts * (1 - beta)
    is_visual = (T1 + T3) * valid_vo
    is_mem = (T2 + T3 * (1 - valid_vo)) * valid_mo
    out = is_visual[..., None] * vo + is_mem[..., None] * mo
    return out, new_vwm, new_wts


if __name__ == "__main__":
    def _run_case(B, S, D, batch_tile, dtype=jnp.float32, atol=1e-5, rtol=1e-5):
        key = jax.random.PRNGKey(0)
        ks = jax.random.split(key, 8)
        valid_vo = jax.random.bernoulli(ks[0], 0.7, (B,)).astype(jnp.float32)
        valid_mo = jax.random.bernoulli(ks[1], 0.7, (B,)).astype(jnp.float32)
        vo = jax.random.normal(ks[2], (B, D), jnp.float32)
        mo = jax.random.normal(ks[3], (B, D), jnp.float32)
        ma = jax.nn.softmax(jax.random.normal(ks[4], (B, S), jnp.float32), axis=-1)
        vwm = jax.random.normal(ks[5], (B, S, D), jnp.float32).astype(dtype)
        tcw = jax.nn.softmax(jax.random.normal(ks[6], (B, 4), jnp.float32), axis=-1)
        wts = jax.nn.one_hot(jnp.arange(B) % S, S, dtype=jnp.float32)

        # Reference first (the kernel aliases / donates vwm & wt_sequential).
        r_obj, r_vwm, r_wts = memory_update_ref(
            valid_vo, valid_mo, vo, mo, ma, vwm.astype(jnp.float32), tcw, wts)

        out_obj, new_vwm, new_wts = memory_update(
            valid_vo, valid_mo, vo, mo, ma, vwm, tcw, wts, batch_tile=batch_tile)
        jax.block_until_ready((out_obj, new_vwm, new_wts))

        assert jnp.allclose(out_obj, r_obj, atol=atol, rtol=rtol), "output_object mismatch"
        assert jnp.allclose(new_vwm.astype(jnp.float32), r_vwm, atol=atol, rtol=rtol), \
            "visual_working_memory mismatch"
        assert jnp.allclose(new_wts, r_wts, atol=atol, rtol=rtol), "wt_sequential mismatch"

    # Flat lane-dense path (D % 128 != 0), 2-step parallel grid, MXU expansion.
    _run_case(B=16, S=8, D=32, batch_tile=8)
    # Flat path with a partial final batch block (B % tb != 0).
    _run_case(B=20, S=8, D=32, batch_tile=8)
    # Native 3-D path (D a multiple of 128 lanes).
    _run_case(B=16, S=8, D=128, batch_tile=8)
    # bf16 vwm: big-tile FMA runs in bf16 in-kernel (tolerance = bf16 rounding).
    _run_case(B=16, S=8, D=128, batch_tile=None, dtype=jnp.bfloat16,
              atol=1e-1, rtol=1e-1)
    print("KERNEL_OK")
</pallas_src>

<mosaic_0001>
module attributes {stable_mosaic.version = 11 : i64} {
  func.func @_memory_update_kernel_flat(%arg0: i32, %arg1: memref<8x6xf32, #tpu.memory_space<vmem>>, %arg2: memref<8x32xf32, #tpu.memory_space<vmem>>, %arg3: memref<8x32xf32, #tpu.memory_space<vmem>>, %arg4: memref<8x8xf32, #tpu.memory_space<vmem>>, %arg5: memref<8x8xf32, #tpu.memory_space<vmem>>, %arg6: memref<8x256xf32, #tpu.memory_space<vmem>>, %arg7: memref<8x256xbf16, #tpu.memory_space<vmem>>, %arg8: memref<32x256xbf16, #tpu.memory_space<vmem>>, %arg9: memref<8x32xf32, #tpu.memory_space<vmem>>, %arg10: memref<8x256xf32, #tpu.memory_space<vmem>>, %arg11: memref<8x8xf32, #tpu.memory_space<vmem>>) attributes {dimension_semantics = [#tpu.dimension_semantics<parallel>], iteration_bounds = array<i64: 2>, scalar_prefetch = 0 : i64, scratch_operands = 0 : i64, tpu.core_type = #tpu.core_type<tc>, window_params = [{transform_indices = @transform_0, window_bounds = array<i64: 8, 6>}, {transform_indices = @transform_1, window_bounds = array<i64: 8, 32>}, {transform_indices = @transform_2, window_bounds = array<i64: 8, 32>}, {transform_indices = @transform_3, window_bounds = array<i64: 8, 8>}, {transform_indices = @transform_4, window_bounds = array<i64: 8, 8>}, {transform_indices = @transform_5, window_bounds = array<i64: 8, 256>}, {pipeline_mode = #tpu.pipeline_mode<synchronous>, transform_indices = @transform_6, window_bounds = array<i64: 8, 256>}, {pipeline_mode = #tpu.pipeline_mode<synchronous>, transform_indices = @transform_7, window_bounds = array<i64: 32, 256>}, {transform_indices = @transform_8, window_bounds = array<i64: 8, 32>}, {transform_indices = @transform_9, window_bounds = array<i64: 8, 256>}, {transform_indices = @transform_10, window_bounds = array<i64: 8, 8>}]} {
    %c0 = arith.constant 0 : index
    %c0_0 = arith.constant 0 : index
    %0 = vector.load %arg1[%c0, %c0_0] : memref<8x6xf32, #tpu.memory_space<vmem>>, vector<8x6xf32>
    %1 = vector.extract_strided_slice %0 {offsets = [0, 0], sizes = [8, 1], strides = [1, 1]} : vector<8x6xf32> to vector<8x1xf32>
    %2 = vector.extract_strided_slice %0 {offsets = [0, 1], sizes = [8, 1], strides = [1, 1]} : vector<8x6xf32> to vector<8x1xf32>
    %3 = vector.extract_strided_slice %0 {offsets = [0, 2], sizes = [8, 1], strides = [1, 1]} : vector<8x6xf32> to vector<8x1xf32>
    %4 = vector.extract_strided_slice %0 {offsets = [0, 3], sizes = [8, 1], strides = [1, 1]} : vector<8x6xf32> to vector<8x1xf32>
    %5 = vector.extract_strided_slice %0 {offsets = [0, 4], sizes = [8, 1], strides = [1, 1]} : vector<8x6xf32> to vector<8x1xf32>
    %6 = vector.extract_strided_slice %0 {offsets = [0, 5], sizes = [8, 1], strides = [1, 1]} : vector<8x6xf32> to vector<8x1xf32>
    %7 = arith.addf %4, %5 : vector<8x1xf32>
    %cst = arith.constant 1.000000e+00 : f32
    %8 = vector.broadcast %cst : f32 to vector<8x1xf32>
    %9 = arith.subf %8, %6 : vector<8x1xf32>
    %10 = arith.mulf %7, %9 : vector<8x1xf32>
    %11 = arith.mulf %10, %1 : vector<8x1xf32>
    %12 = arith.mulf %2, %11 : vector<8x1xf32>
    %cst_1 = arith.constant 1.000000e+00 : f32
    %13 = vector.broadcast %cst_1 : f32 to vector<8x1xf32>
    %14 = arith.subf %13, %2 : vector<8x1xf32>
    %15 = arith.mulf %14, %11 : vector<8x1xf32>
    %c0_2 = arith.constant 0 : index
    %c0_3 = arith.constant 0 : index
    %16 = vector.load %arg4[%c0_2, %c0_3] : memref<8x8xf32, #tpu.memory_space<vmem>>, vector<8x8xf32>
    %c0_4 = arith.constant 0 : index
    %c0_5 = arith.constant 0 : index
    %17 = vector.load %arg5[%c0_4, %c0_5] : memref<8x8xf32, #tpu.memory_space<vmem>>, vector<8x8xf32>
    %18 = vector.broadcast %12 : vector<8x1xf32> to vector<8x8xf32>
    %19 = arith.mulf %18, %16 : vector<8x8xf32>
    %20 = vector.broadcast %15 : vector<8x1xf32> to vector<8x8xf32>
    %21 = arith.mulf %20, %17 : vector<8x8xf32>
    %22 = arith.addf %19, %21 : vector<8x8xf32>
    %23 = vector.extract_strided_slice %17 {offsets = [0, 7], sizes = [8, 1], strides = [1, 1]} : vector<8x8xf32> to vector<8x1xf32>
    %24 = vector.extract_strided_slice %17 {offsets = [0, 0], sizes = [8, 7], strides = [1, 1]} : vector<8x8xf32> to vector<8x7xf32>
    %25 = tpu.concatenate %23, %24 in 1 : vector<8x1xf32>, vector<8x7xf32> -> vector<8x8xf32>
    %26 = arith.subf %25, %17 : vector<8x8xf32>
    %27 = vector.broadcast %15 : vector<8x1xf32> to vector<8x8xf32>
    %28 = arith.mulf %27, %26 : vector<8x8xf32>
    %29 = arith.addf %17, %28 : vector<8x8xf32>
    %c0_6 = arith.constant 0 : index
    %c0_7 = arith.constant 0 : index
    %30 = vector.load %arg11[%c0_6, %c0_7] : memref<8x8xf32, #tpu.memory_space<vmem>>, vector<8x8xf32>
    tpu.vector_store %arg11[%c0_6, %c0_7], %29 {strides = array<i32>} : memref<8x8xf32, #tpu.memory_space<vmem>>, vector<8x8xf32>,
    %c0_8 = arith.constant 0 : index
    %c0_9 = arith.constant 0 : index
    %31 = vector.load %arg2[%c0_8, %c0_9] : memref<8x32xf32, #tpu.memory_space<vmem>>, vector<8x32xf32>
    %c0_10 = arith.constant 0 : index
    %c0_11 = arith.constant 0 : index
    %32 = vector.load %arg3[%c0_10, %c0_11] : memref<8x32xf32, #tpu.memory_space<vmem>>, vector<8x32xf32>
    %33 = arith.addf %3, %5 : vector<8x1xf32>
    %34 = arith.mulf %33, %1 : vector<8x1xf32>
    %cst_12 = arith.constant 1.000000e+00 : f32
    %35 = vector.broadcast %cst_12 : f32 to vector<8x1xf32>
    %36 = arith.subf %35, %1 : vector<8x1xf32>
    %37 = arith.mulf %5, %36 : vector<8x1xf32>
    %38 = arith.addf %4, %37 : vector<8x1xf32>
    %39 = arith.mulf %38, %2 : vector<8x1xf32>
    %40 = vector.broadcast %34 : vector<8x1xf32> to vector<8x32xf32>
    %41 = arith.mulf %40, %31 : vector<8x32xf32>
    %42 = vector.broadcast %39 : vector<8x1xf32> to vector<8x32xf32>
    %43 = arith.mulf %42, %32 : vector<8x32xf32>
    %44 = arith.addf %41, %43 : vector<8x32xf32>
    %c0_13 = arith.constant 0 : index
    %c0_14 = arith.constant 0 : index
    %45 = vector.load %arg9[%c0_13, %c0_14] : memref<8x32xf32, #tpu.memory_space<vmem>>, vector<8x32xf32>
    tpu.vector_store %arg9[%c0_13, %c0_14], %44 {strides = array<i32>} : memref<8x32xf32, #tpu.memory_space<vmem>>, vector<8x32xf32>,
    %c0_15 = arith.constant 0 : index
    %c0_16 = arith.constant 0 : index
    %46 = vector.load %arg7[%c0_15, %c0_16] : memref<8x256xbf16, #tpu.memory_space<vmem>>, vector<8x256xbf16>
    %47 = arith.truncf %22 : vector<8x8xf32> to vector<8x8xbf16>
    %48 = arith.extf %47 : vector<8x8xbf16> to vector<8x8xf32>
    %49 = arith.subf %22, %48 : vector<8x8xf32>
    %50 = arith.truncf %49 : vector<8x8xf32> to vector<8x8xbf16>
    %51 = arith.extf %50 : vector<8x8xbf16> to vector<8x8xf32>
    %52 = arith.subf %49, %51 : vector<8x8xf32>
    %53 = arith.truncf %52 : vector<8x8xf32> to vector<8x8xbf16>
    %cst_17 = arith.constant dense<0.000000e+00> : vector<8x256xf32>
    %54 = tpu.matmul %47, %46, %cst_17 {dimension_numbers = #tpu.dot_dimension_numbers<[1], [0], [0], [1], [0, 0, 1, 1], [], []>} : vector<8x8xbf16>, vector<8x256xbf16>, vector<8x256xf32> -> vector<8x256xf32>
    %cst_18 = arith.constant dense<0.000000e+00> : vector<8x256xf32>
    %55 = tpu.matmul %50, %46, %cst_18 {dimension_numbers = #tpu.dot_dimension_numbers<[1], [0], [0], [1], [0, 0, 1, 1], [], []>} : vector<8x8xbf16>, vector<8x256xbf16>, vector<8x256xf32> -> vector<8x256xf32>
    %56 = arith.addf %54, %55 : vector<8x256xf32>
    %cst_19 = arith.constant dense<0.000000e+00> : vector<8x256xf32>
    %57 = tpu.matmul %53, %46, %cst_19 {dimension_numbers = #tpu.dot_dimension_numbers<[1], [0], [0], [1], [0, 0, 1, 1], [], []>} : vector<8x8xbf16>, vector<8x256xbf16>, vector<8x256xf32> -> vector<8x256xf32>
    %58 = arith.addf %56, %57 : vector<8x256xf32>
    %c0_20 = arith.constant 0 : index
    %c0_21 = arith.constant 0 : index
    %59 = vector.load %arg8[%c0_20, %c0_21] : memref<32x256xbf16, #tpu.memory_space<vmem>>, vector<32x256xbf16>
    %60 = arith.truncf %31 : vector<8x32xf32> to vector<8x32xbf16>
    %61 = arith.extf %60 : vector<8x32xbf16> to vector<8x32xf32>
    %62 = arith.subf %31, %61 : vector<8x32xf32>
    %63 = arith.truncf %62 : vector<8x32xf32> to vector<8x32xbf16>
    %64 = arith.extf %63 : vector<8x32xbf16> to vector<8x32xf32>
    %65 = arith.subf %62, %64 : vector<8x32xf32>
    %66 = arith.truncf %65 : vector<8x32xf32> to vector<8x32xbf16>
    %cst_22 = arith.constant dense<0.000000e+00> : vector<8x256xf32>
    %67 = tpu.matmul %60, %59, %cst_22 {dimension_numbers = #tpu.dot_dimension_numbers<[1], [0], [0], [1], [0, 0, 1, 1], [], []>} : vector<8x32xbf16>, vector<32x256xbf16>, vector<8x256xf32> -> vector<8x256xf32>
    %cst_23 = arith.constant dense<0.000000e+00> : vector<8x256xf32>
    %68 = tpu.matmul %63, %59, %cst_23 {dimension_numbers = #tpu.dot_dimension_numbers<[1], [0], [0], [1], [0, 0, 1, 1], [], []>} : vector<8x32xbf16>, vector<32x256xbf16>, vector<8x256xf32> -> vector<8x256xf32>
    %69 = arith.addf %67, %68 : vector<8x256xf32>
    %cst_24 = arith.constant dense<0.000000e+00> : vector<8x256xf32>
    %70 = tpu.matmul %66, %59, %cst_24 {dimension_numbers = #tpu.dot_dimension_numbers<[1], [0], [0], [1], [0, 0, 1, 1], [], []>} : vector<8x32xbf16>, vector<32x256xbf16>, vector<8x256xf32> -> vector<8x256xf32>
    %71 = arith.addf %69, %70 : vector<8x256xf32>
    %c0_25 = arith.constant 0 : index
    %c0_26 = arith.constant 0 : index
    %72 = vector.load %arg6[%c0_25, %c0_26] : memref<8x256xf32, #tpu.memory_space<vmem>>, vector<8x256xf32>
    %73 = arith.subf %71, %72 : vector<8x256xf32>
    %74 = arith.mulf %58, %73 : vector<8x256xf32>
    %75 = arith.addf %72, %74 : vector<8x256xf32>
    %c0_27 = arith.constant 0 : index
    %c0_28 = arith.constant 0 : index
    %76 = vector.load %arg10[%c0_27, %c0_28] : memref<8x256xf32, #tpu.memory_space<vmem>>, vector<8x256xf32>
    tpu.vector_store %arg10[%c0_27, %c0_28], %75 {strides = array<i32>} : memref<8x256xf32, #tpu.memory_space<vmem>>, vector<8x256xf32>,
    return
  }
  func.func @transform_0(%arg0: i32) -> (i32, i32) {
    %c0_i32 = arith.constant 0 : i32
    %c0_i32_0 = arith.constant 0 : i32
    return %arg0, %c0_i32 : i32, i32
  }
  func.func @transform_1(%arg0: i32) -> (i32, i32) {
    %c0_i32 = arith.constant 0 : i32
    %c0_i32_0 = arith.constant 0 : i32
    return %arg0, %c0_i32 : i32, i32
  }
  func.func @transform_2(%arg0: i32) -> (i32, i32) {
    %c0_i32 = arith.constant 0 : i32
    %c0_i32_0 = arith.constant 0 : i32
    return %arg0, %c0_i32 : i32, i32
  }
  func.func @transform_3(%arg0: i32) -> (i32, i32) {
    %c0_i32 = arith.constant 0 : i32
    %c0_i32_0 = arith.constant 0 : i32
    return %arg0, %c0_i32 : i32, i32
  }
  func.func @transform_4(%arg0: i32) -> (i32, i32) {
    %c0_i32 = arith.constant 0 : i32
    %c0_i32_0 = arith.constant 0 : i32
    return %arg0, %c0_i32 : i32, i32
  }
  func.func @transform_5(%arg0: i32) -> (i32, i32) {
    %c0_i32 = arith.constant 0 : i32
    %c0_i32_0 = arith.constant 0 : i32
    return %arg0, %c0_i32 : i32, i32
  }
  func.func @transform_6(%arg0: i32) -> (i32, i32) {
    %c0_i32 = arith.constant 0 : i32
    %c0_i32_0 = arith.constant 0 : i32
    %c0_i32_1 = arith.constant 0 : i32
    return %c0_i32, %c0_i32_0 : i32, i32
  }
  func.func @transform_7(%arg0: i32) -> (i32, i32) {
    %c0_i32 = arith.constant 0 : i32
    %c0_i32_0 = arith.constant 0 : i32
    %c0_i32_1 = arith.constant 0 : i32
    return %c0_i32, %c0_i32_0 : i32, i32
  }
  func.func @transform_8(%arg0: i32) -> (i32, i32) {
    %c0_i32 = arith.constant 0 : i32
    %c0_i32_0 = arith.constant 0 : i32
    return %arg0, %c0_i32 : i32, i32
  }
  func.func @transform_9(%arg0: i32) -> (i32, i32) {
    %c0_i32 = arith.constant 0 : i32
    %c0_i32_0 = arith.constant 0 : i32
    return %arg0, %c0_i32 : i32, i32
  }
  func.func @transform_10(%arg0: i32) -> (i32, i32) {
    %c0_i32 = arith.constant 0 : i32
    %c0_i32_0 = arith.constant 0 : i32
    return %arg0, %c0_i32 : i32, i32
  }
}

</mosaic_0001>

<llo_original>
// kernel: tpu_custom_call.1
$region0: #{tpu_custom_call.1}
  #allocation0 [shape = 'u32[]', space=smem, size = 0x4, offset = 0x4, fixed_abs, tag = 'smem constant byte address 0x4 - core index']
  #allocation1 [shape = 'u32[144,128]{1,0:T(1,128)}', space=vmem, size = 0x12000, scoped, tag = 'internal scratch']
  %s0 = inlined_call_operand.vmem [shape: f32[16,6], index: 0, kind: input, shape index: {}]
  %s1 = inlined_call_operand.vmem [shape: f32[16,32], index: 1, kind: input, shape index: {}]
  %s2 = inlined_call_operand.vmem [shape: f32[16,32], index: 2, kind: input, shape index: {}]
  %s3 = inlined_call_operand.vmem [shape: f32[16,8], index: 3, kind: input, shape index: {}]
  %s4 = inlined_call_operand.vmem [shape: f32[16,8], index: 4, kind: input, shape index: {}, may-alias: {4,10}]
  %s5 = inlined_call_operand.vmem [shape: f32[16,256], index: 5, kind: input, shape index: {}, may-alias: {5,9}]
  %s6 = inlined_call_operand.vmem [shape: bf16[8,256], index: 6, kind: input, shape index: {}]
  %s7 = inlined_call_operand.vmem [shape: bf16[32,256], index: 7, kind: input, shape index: {}]
  %s8 = inlined_call_operand.hbm [shape: f32[16,32], index: 8, kind: output, shape index: {0}]
  %s9 = inlined_call_operand.vmem [shape: f32[16,256], index: 9, kind: output, shape index: {1}, may-alias: {5,9}]
  %s10 = inlined_call_operand.vmem [shape: f32[16,8], index: 10, kind: output, shape index: {2}, may-alias: {4,10}]
  %11 = xla_tuple %s8, %s9, %s10
  %s12 = sld [smem:[#allocation0]]
  $region81: #{tpu_custom_call.1} parent=0
    _
  %s14 = ssub.s32 1, %s12
  %s15 = scalar_select 0, %s14, %s12
  $region1: #{tpu_custom_call.1} parent=0
    #allocation2 [shape = 'u8[8192]{0}', space=vmem, size = 0x2000, scoped, tag = 'output window, operand 0']
    #allocation3 [shape = 's32[2]{0}', space=sflag, size = 0x8, scoped, tag = 'scoped memory for tpu_custom_call.1']
    %16 = vsyncpa [#allocation3], 0
    %s17 = scalar_lea.sflag [#allocation3], 1
    %18 = vsyncpa %s17, 0
    loop: start=0, step=1, limit=4
    $region2: #{tpu_custom_call.1} parent=1 // loop_pre_header
      _
    $region3: #{tpu_custom_call.1} parent=1 // loop_header
      %s20 = sphi 0, %s24
      %p21 = scmp.ge.s32.totalorder %s20, 4
      %s30 = sphi 0, %s32
      %s33 = sphi 0, %s30
      %s34 = sphi 0, %s33
      %s50 = sphi 0, %s34
      %s56 = sphi 0, %s58
      %s59 = sphi 0, %s56
      %s60 = sphi 0, %s59
      %s76 = sphi 0, %s60
      %s82 = sphi 0, %s84
      %s85 = sphi 0, %s82
      %s86 = sphi 0, %s85
      %s102 = sphi 0, %s86
      %s108 = sphi 0, %s110
      %s111 = sphi 0, %s108
      %s112 = sphi 0, %s111
      %s128 = sphi 0, %s112
      %s134 = sphi 0, %s136
      %s137 = sphi 0, %s134
      %s138 = sphi 0, %s137
      %s154 = sphi 0, %s138
      %s160 = sphi 0, %s162
      %s163 = sphi 0, %s160
      %s164 = sphi 0, %s163
      %s180 = sphi 0, %s164
      %s184 = sphi 0, %s184
      %s186 = sphi 0, %s184
      %s187 = sphi 0, %s186
      %s201 = sphi 0, %s187
      %s205 = sphi 0, %s205
      %s207 = sphi 0, %s205
      %s208 = sphi 0, %s207
      %s222 = sphi 0, %s208
      %s228 = sphi 0, %s230
      %s231 = sphi 0, %s228
      %s232 = sphi 0, %s231
      %s248 = sphi 0, %s232
      %s254 = sphi 0, %s256
      %s257 = sphi 0, %s254
      %s258 = sphi 0, %s257
      %s274 = sphi 0, %s258
      %s280 = sphi 0, %s282
      %s283 = sphi 0, %s280
      %s284 = sphi 0, %s283
      %s300 = sphi 0, %s284
    $region4: #{tpu_custom_call.1} parent=1 // loop_header_branch
      %23 = sbr.rel (%p21) target = $region8
    $region5: #{tpu_custom_call.1} parent=1 // loop_body
      %s25 = ssub.s32 %s20, 1
      %s26 = ssub.s32 %s20, 2
      %s27 = sadd.s32 %s20, 1
      %s28 = ssub.s32 %s20, %s27
      %p29 = scmp.eq.s32.totalorder %s28, 0
      %s31 = sadd.s32 %s30, 1
      %s32 = scalar_select %p29, %s30, %s31
      %p35 = pneg %p29
      %p36 = scmp.eq.s32.totalorder %s20, 1
      %p37 = por %p35, %p36
      %p38 = scmp.ne.s32.totalorder %s30, %s33
      %p39 = scmp.eq.s32.totalorder %s20, 0
      %p40 = por %p38, %p39
      %p41 = scmp.ne.s32.totalorder %s30, %s33
      %p42 = scmp.eq.s32.totalorder %s25, 1
      %p43 = por %p41, %p42
      %p44 = scmp.ne.s32.totalorder %s33, %s34
      %p45 = scmp.eq.s32.totalorder %s25, 0
      %p46 = por %p44, %p45
      %p47 = scmp.ne.s32.totalorder %s33, %s34
      %p48 = scmp.eq.s32.totalorder %s26, 1
      %p49 = por %p47, %p48
      %p51 = scmp.ne.s32.totalorder %s34, %s50
      %p52 = scmp.eq.s32.totalorder %s26, 0
      %p53 = por %p51, %p52
      %s54 = ssub.s32 %s20, %s27
      %p55 = scmp.eq.s32.totalorder %s54, 0
      %s57 = sadd.s32 %s56, 1
      %s58 = scalar_select %p55, %s56, %s57
      %p61 = pneg %p55
      %p62 = scmp.eq.s32.totalorder %s20, 1
      %p63 = por %p61, %p62
      %p64 = scmp.ne.s32.totalorder %s56, %s59
      %p65 = scmp.eq.s32.totalorder %s20, 0
      %p66 = por %p64, %p65
      %p67 = scmp.ne.s32.totalorder %s56, %s59
      %p68 = scmp.eq.s32.totalorder %s25, 1
      %p69 = por %p67, %p68
      %p70 = scmp.ne.s32.totalorder %s59, %s60
      %p71 = scmp.eq.s32.totalorder %s25, 0
      %p72 = por %p70, %p71
      %p73 = scmp.ne.s32.totalorder %s59, %s60
      %p74 = scmp.eq.s32.totalorder %s26, 1
      %p75 = por %p73, %p74
      %p77 = scmp.ne.s32.totalorder %s60, %s76
      %p78 = scmp.eq.s32.totalorder %s26, 0
      %p79 = por %p77, %p78
      %s80 = ssub.s32 %s20, %s27
      %p81 = scmp.eq.s32.totalorder %s80, 0
      %s83 = sadd.s32 %s82, 1
      %s84 = scalar_select %p81, %s82, %s83
      %p87 = pneg %p81
      %p88 = scmp.eq.s32.totalorder %s20, 1
      %p89 = por %p87, %p88
      %p90 = scmp.ne.s32.totalorder %s82, %s85
      %p91 = scmp.eq.s32.totalorder %s20, 0
      %p92 = por %p90, %p91
      %p93 = scmp.ne.s32.totalorder %s82, %s85
      %p94 = scmp.eq.s32.totalorder %s25, 1
      %p95 = por %p93, %p94
      %p96 = scmp.ne.s32.totalorder %s85, %s86
      %p97 = scmp.eq.s32.totalorder %s25, 0
      %p98 = por %p96, %p97
      %p99 = scmp.ne.s32.totalorder %s85, %s86
      %p100 = scmp.eq.s32.totalorder %s26, 1
      %p101 = por %p99, %p100
      %p103 = scmp.ne.s32.totalorder %s86, %s102
      %p104 = scmp.eq.s32.totalorder %s26, 0
      %p105 = por %p103, %p104
      %s106 = ssub.s32 %s20, %s27
      %p107 = scmp.eq.s32.totalorder %s106, 0
      %s109 = sadd.s32 %s108, 1
      %s110 = scalar_select %p107, %s108, %s109
      %p113 = pneg %p107
      %p114 = scmp.eq.s32.totalorder %s20, 1
      %p115 = por %p113, %p114
      %p116 = scmp.ne.s32.totalorder %s108, %s111
      %p117 = scmp.eq.s32.totalorder %s20, 0
      %p118 = por %p116, %p117
      %p119 = scmp.ne.s32.totalorder %s108, %s111
      %p120 = scmp.eq.s32.totalorder %s25, 1
      %p121 = por %p119, %p120
      %p122 = scmp.ne.s32.totalorder %s111, %s112
      %p123 = scmp.eq.s32.totalorder %s25, 0
      %p124 = por %p122, %p123
      %p125 = scmp.ne.s32.totalorder %s111, %s112
      %p126 = scmp.eq.s32.totalorder %s26, 1
      %p127 = por %p125, %p126
      %p129 = scmp.ne.s32.totalorder %s112, %s128
      %p130 = scmp.eq.s32.totalorder %s26, 0
      %p131 = por %p129, %p130
      %s132 = ssub.s32 %s20, %s27
      %p133 = scmp.eq.s32.totalorder %s132, 0
      %s135 = sadd.s32 %s134, 1
      %s136 = scalar_select %p133, %s134, %s135
      %p139 = pneg %p133
      %p140 = scmp.eq.s32.totalorder %s20, 1
      %p141 = por %p139, %p140
      %p142 = scmp.ne.s32.totalorder %s134, %s137
      %p143 = scmp.eq.s32.totalorder %s20, 0
      %p144 = por %p142, %p143
      %p145 = scmp.ne.s32.totalorder %s134, %s137
      %p146 = scmp.eq.s32.totalorder %s25, 1
      %p147 = por %p145, %p146
      %p148 = scmp.ne.s32.totalorder %s137, %s138
      %p149 = scmp.eq.s32.totalorder %s25, 0
      %p150 = por %p148, %p149
      %p151 = scmp.ne.s32.totalorder %s137, %s138
      %p152 = scmp.eq.s32.totalorder %s26, 1
      %p153 = por %p151, %p152
      %p155 = scmp.ne.s32.totalorder %s138, %s154
      %p156 = scmp.eq.s32.totalorder %s26, 0
      %p157 = por %p155, %p156
      %s158 = ssub.s32 %s20, %s27
      %p159 = scmp.eq.s32.totalorder %s158, 0
      %s161 = sadd.s32 %s160, 1
      %s162 = scalar_select %p159, %s160, %s161
      %p165 = pneg %p159
      %p166 = scmp.eq.s32.totalorder %s20, 1
      %p167 = por %p165, %p166
      %p168 = scmp.ne.s32.totalorder %s160, %s163
      %p169 = scmp.eq.s32.totalorder %s20, 0
      %p170 = por %p168, %p169
      %p171 = scmp.ne.s32.totalorder %s160, %s163
      %p172 = scmp.eq.s32.totalorder %s25, 1
      %p173 = por %p171, %p172
      %p174 = scmp.ne.s32.totalorder %s163, %s164
      %p175 = scmp.eq.s32.totalorder %s25, 0
      %p176 = por %p174, %p175
      %p177 = scmp.ne.s32.totalorder %s163, %s164
      %p178 = scmp.eq.s32.totalorder %s26, 1
      %p179 = por %p177, %p178
      %p181 = scmp.ne.s32.totalorder %s164, %s180
      %p182 = scmp.eq.s32.totalorder %s26, 0
      %p183 = por %p181, %p182
      %s185 = sadd.s32 %s184, 1
      %p188 = scmp.eq.s32.totalorder %s20, 1
      %p189 = scmp.ne.s32.totalorder %s184, %s186
      %p190 = scmp.eq.s32.totalorder %s20, 0
      %p191 = por %p189, %p190
      %p192 = scmp.ne.s32.totalorder %s184, %s186
      %p193 = scmp.eq.s32.totalorder %s25, 1
      %p194 = por %p192, %p193
      %p195 = scmp.ne.s32.totalorder %s186, %s187
      %p196 = scmp.eq.s32.totalorder %s25, 0
      %p197 = por %p195, %p196
      %p198 = scmp.ne.s32.totalorder %s186, %s187
      %p199 = scmp.eq.s32.totalorder %s26, 1
      %p200 = por %p198, %p199
      %p202 = scmp.ne.s32.totalorder %s187, %s201
      %p203 = scmp.eq.s32.totalorder %s26, 0
      %p204 = por %p202, %p203
      %s206 = sadd.s32 %s205, 1
      %p209 = scmp.eq.s32.totalorder %s20, 1
      %p210 = scmp.ne.s32.totalorder %s205, %s207
      %p211 = scmp.eq.s32.totalorder %s20, 0
      %p212 = por %p210, %p211
      %p213 = scmp.ne.s32.totalorder %s205, %s207
      %p214 = scmp.eq.s32.totalorder %s25, 1
      %p215 = por %p213, %p214
      %p216 = scmp.ne.s32.totalorder %s207, %s208
      %p217 = scmp.eq.s32.totalorder %s25, 0
      %p218 = por %p216, %p217
      %p219 = scmp.ne.s32.totalorder %s207, %s208
      %p220 = scmp.eq.s32.totalorder %s26, 1
      %p221 = por %p219, %p220
      %p223 = scmp.ne.s32.totalorder %s208, %s222
      %p224 = scmp.eq.s32.totalorder %s26, 0
      %p225 = por %p223, %p224
      %s226 = ssub.s32 %s20, %s27
      %p227 = scmp.eq.s32.totalorder %s226, 0
      %s229 = sadd.s32 %s228, 1
      %s230 = scalar_select %p227, %s228, %s229
      %p233 = pneg %p227
      %p234 = scmp.eq.s32.totalorder %s20, 1
      %p235 = por %p233, %p234
      %p236 = scmp.ne.s32.totalorder %s228, %s231
      %p237 = scmp.eq.s32.totalorder %s20, 0
      %p238 = por %p236, %p237
      %p239 = scmp.ne.s32.totalorder %s228, %s231
      %p240 = scmp.eq.s32.totalorder %s25, 1
      %p241 = por %p239, %p240
      %p242 = scmp.ne.s32.totalorder %s231, %s232
      %p243 = scmp.eq.s32.totalorder %s25, 0
      %p244 = por %p242, %p243
      %p245 = scmp.ne.s32.totalorder %s231, %s232
      %p246 = scmp.eq.s32.totalorder %s26, 1
      %p247 = por %p245, %p246
      %p249 = scmp.ne.s32.totalorder %s232, %s248
      %p250 = scmp.eq.s32.totalorder %s26, 0
      %p251 = por %p249, %p250
      %s252 = ssub.s32 %s20, %s27
      %p253 = scmp.eq.s32.totalorder %s252, 0
      %s255 = sadd.s32 %s254, 1
      %s256 = scalar_select %p253, %s254, %s255
      %p259 = pneg %p253
      %p260 = scmp.eq.s32.totalorder %s20, 1
      %p261 = por %p259, %p260
      %p262 = scmp.ne.s32.totalorder %s254, %s257
      %p263 = scmp.eq.s32.totalorder %s20, 0
      %p264 = por %p262, %p263
      %p265 = scmp.ne.s32.totalorder %s254, %s257
      %p266 = scmp.eq.s32.totalorder %s25, 1
      %p267 = por %p265, %p266
      %p268 = scmp.ne.s32.totalorder %s257, %s258
      %p269 = scmp.eq.s32.totalorder %s25, 0
      %p270 = por %p268, %p269
      %p271 = scmp.ne.s32.totalorder %s257, %s258
      %p272 = scmp.eq.s32.totalorder %s26, 1
      %p273 = por %p271, %p272
      %p275 = scmp.ne.s32.totalorder %s258, %s274
      %p276 = scmp.eq.s32.totalorder %s26, 0
      %p277 = por %p275, %p276
      %s278 = ssub.s32 %s20, %s27
      %p279 = scmp.eq.s32.totalorder %s278, 0
      %s281 = sadd.s32 %s280, 1
      %s282 = scalar_select %p279, %s280, %s281
      %p285 = pneg %p279
      %p286 = scmp.eq.s32.totalorder %s20, 1
      %p287 = por %p285, %p286
      %p288 = scmp.ne.s32.totalorder %s280, %s283
      %p289 = scmp.eq.s32.totalorder %s20, 0
      %p290 = por %p288, %p289
      %p291 = scmp.ne.s32.totalorder %s280, %s283
      %p292 = scmp.eq.s32.totalorder %s25, 1
      %p293 = por %p291, %p292
      %p294 = scmp.ne.s32.totalorder %s283, %s284
      %p295 = scmp.eq.s32.totalorder %s25, 0
      %p296 = por %p294, %p295
      %p297 = scmp.ne.s32.totalorder %s283, %s284
      %p298 = scmp.eq.s32.totalorder %s26, 1
      %p299 = por %p297, %p298
      %p301 = scmp.ne.s32.totalorder %s284, %s300
      %p302 = scmp.eq.s32.totalorder %s26, 0
      %p303 = por %p301, %p302
      %p304 = scmp.le.s32.totalorder 1, %s20
      %p305 = scmp.lt.s32.totalorder %s20, 3
      %p306 = pnand %p304, %p305
      %p307 = pneg %p306
      // Predicated region
      $region9: #{tpu_custom_call.1} parent=5 // pred_check
        _
      $region10: #{tpu_custom_call.1} parent=5 // pred_check_branch
        %309 = sbr.rel (%p306) target = $region12
      $region11: #{tpu_custom_call.1} parent=5 // pred_region
        %s310 = ssub.s32 %s20, 1
        // Predicated region
        $region13: #{tpu_custom_call.1} parent=11 // pred_check
          %p311 = pneg %p197
        $region14: #{tpu_custom_call.1} parent=11 // pred_check_branch
          %313 = sbr.rel (%p311) target = $region16
        $region15: #{tpu_custom_call.1} parent=11 // pred_region
          _
        $region16: #{tpu_custom_call.1} parent=11 // pred_fallthru
          _
        // Predicated region
        $region17: #{tpu_custom_call.1} parent=11 // pred_check
          %p314 = pneg %p218
        $region18: #{tpu_custom_call.1} parent=11 // pred_check_branch
          %316 = sbr.rel (%p314) target = $region20
        $region19: #{tpu_custom_call.1} parent=11 // pred_region
          _
        $region20: #{tpu_custom_call.1} parent=11 // pred_fallthru
          _
      $region12: #{tpu_custom_call.1} parent=5 // pred_fallthru
        _
      %p317 = scmp.lt.s32.totalorder %s20, 2
      // Predicated region
      $region21: #{tpu_custom_call.1} parent=5 // pred_check
        %p318 = pneg %p317
      $region22: #{tpu_custom_call.1} parent=5 // pred_check_branch
        %320 = sbr.rel (%p318) target = $region24
      $region23: #{tpu_custom_call.1} parent=5 // pred_region
        // Predicated region
        $region25: #{tpu_custom_call.1} parent=23 // pred_check
          %p321 = pneg %p40
        $region26: #{tpu_custom_call.1} parent=23 // pred_check_branch
          %323 = sbr.rel (%p321) target = $region28
        $region27: #{tpu_custom_call.1} parent=23 // pred_region
          %p324 = scmp.lt.s32.totalorder %s20, 1
          %s325 = scalar_select %p324, %s20, 1
          %s326 = smul.addr %s325, 8
          %s327 = scalar_lea.vmem %s0, %s326
        $region28: #{tpu_custom_call.1} parent=23 // pred_fallthru
          _
        // Predicated region
        $region29: #{tpu_custom_call.1} parent=23 // pred_check
          %p328 = pneg %p66
        $region30: #{tpu_custom_call.1} parent=23 // pred_check_branch
          %330 = sbr.rel (%p328) target = $region32
        $region31: #{tpu_custom_call.1} parent=23 // pred_region
          %p331 = scmp.lt.s32.totalorder %s20, 1
          %s332 = scalar_select %p331, %s20, 1
          %s333 = smul.addr %s332, 8
          %s334 = scalar_lea.vmem %s1, %s333
        $region32: #{tpu_custom_call.1} parent=23 // pred_fallthru
          _
        // Predicated region
        $region33: #{tpu_custom_call.1} parent=23 // pred_check
          %p335 = pneg %p92
        $region34: #{tpu_custom_call.1} parent=23 // pred_check_branch
          %337 = sbr.rel (%p335) target = $region36
        $region35: #{tpu_custom_call.1} parent=23 // pred_region
          %p338 = scmp.lt.s32.totalorder %s20, 1
          %s339 = scalar_select %p338, %s20, 1
          %s340 = smul.addr %s339, 8
          %s341 = scalar_lea.vmem %s2, %s340
        $region36: #{tpu_custom_call.1} parent=23 // pred_fallthru
          _
        // Predicated region
        $region37: #{tpu_custom_call.1} parent=23 // pred_check
          %p342 = pneg %p118
        $region38: #{tpu_custom_call.1} parent=23 // pred_check_branch
          %344 = sbr.rel (%p342) target = $region40
        $region39: #{tpu_custom_call.1} parent=23 // pred_region
          %p345 = scmp.lt.s32.totalorder %s20, 1
          %s346 = scalar_select %p345, %s20, 1
          %s347 = smul.addr %s346, 8
          %s348 = scalar_lea.vmem %s3, %s347
        $region40: #{tpu_custom_call.1} parent=23 // pred_fallthru
          _
        // Predicated region
        $region41: #{tpu_custom_call.1} parent=23 // pred_check
          %p349 = pneg %p144
        $region42: #{tpu_custom_call.1} parent=23 // pred_check_branch
          %351 = sbr.rel (%p349) target = $region44
        $region43: #{tpu_custom_call.1} parent=23 // pred_region
          %p352 = scmp.lt.s32.totalorder %s20, 1
          %s353 = scalar_select %p352, %s20, 1
          %s354 = smul.addr %s353, 8
          %s355 = scalar_lea.vmem %s4, %s354
        $region44: #{tpu_custom_call.1} parent=23 // pred_fallthru
          _
        // Predicated region
        $region45: #{tpu_custom_call.1} parent=23 // pred_check
          %p356 = pneg %p170
        $region46: #{tpu_custom_call.1} parent=23 // pred_check_branch
          %358 = sbr.rel (%p356) target = $region48
        $region47: #{tpu_custom_call.1} parent=23 // pred_region
          %p359 = scmp.lt.s32.totalorder %s20, 1
          %s360 = scalar_select %p359, %s20, 1
          %s361 = smul.addr %s360, 2
          %s362 = smul.addr %s361, 8
          %s363 = scalar_lea.vmem %s5, %s362
        $region48: #{tpu_custom_call.1} parent=23 // pred_fallthru
          _
      $region24: #{tpu_custom_call.1} parent=5 // pred_fallthru
        _
      %p364 = scmp.le.s32.totalorder 1, %s20
      %p365 = scmp.lt.s32.totalorder %s20, 3
      %p366 = pnand %p364, %p365
      %p367 = pneg %p366
      // Predicated region
      $region49: #{tpu_custom_call.1} parent=5 // pred_check
        _
      $region50: #{tpu_custom_call.1} parent=5 // pred_check_branch
        %369 = sbr.rel (%p366) target = $region52
      $region51: #{tpu_custom_call.1} parent=5 // pred_region
        %s370 = ssub.s32 %s20, 1
        %p371 = scmp.lt.s32.totalorder %s25, 1
        %s372 = scalar_select %p371, %s25, 1
        %s373 = smul.addr %s372, 8
        %s374 = scalar_lea.vmem %s0, %s373
        %p375 = pneg %p46
        %p376 = pneg %p43
        %p377 = scmp.lt.s32.totalorder %s25, 1
        %s378 = scalar_select %p377, %s25, 1
        %s379 = smul.addr %s378, 8
        %s380 = scalar_lea.vmem %s1, %s379
        %p381 = pneg %p72
        %p382 = pneg %p69
        %p383 = scmp.lt.s32.totalorder %s25, 1
        %s384 = scalar_select %p383, %s25, 1
        %s385 = smul.addr %s384, 8
        %s386 = scalar_lea.vmem %s2, %s385
        %p387 = pneg %p98
        %p388 = pneg %p95
        %p389 = scmp.lt.s32.totalorder %s25, 1
        %s390 = scalar_select %p389, %s25, 1
        %s391 = smul.addr %s390, 8
        %s392 = scalar_lea.vmem %s3, %s391
        %p393 = pneg %p124
        %p394 = pneg %p121
        %p395 = scmp.lt.s32.totalorder %s25, 1
        %s396 = scalar_select %p395, %s25, 1
        %s397 = smul.addr %s396, 8
        %s398 = scalar_lea.vmem %s4, %s397
        %p399 = pneg %p150
        %p400 = pneg %p147
        %p401 = scmp.lt.s32.totalorder %s25, 1
        %s402 = scalar_select %p401, %s25, 1
        %s403 = smul.addr %s402, 2
        %s404 = smul.addr %s403, 8
        %s405 = scalar_lea.vmem %s5, %s404
        %p406 = pneg %p176
        %p407 = pneg %p173
        %p408 = pneg %p197
        %p409 = pneg %p194
        %p410 = pneg %p218
        %p411 = pneg %p215
        %p412 = pneg %p244
        %p413 = pneg %p241
        %s414 = sand.u32 %s231, 1
        %s415 = scalar_lea.sflag [#allocation3], %s414
        %s416 = sand.u32 %s231, 1
        %s417 = smul.addr %s416, 8
        %s418 = scalar_lea.vmem [#allocation2], %s417
        %p419 = pneg %p270
        %p420 = pneg %p267
        %p421 = scmp.lt.s32.totalorder %s25, 1
        %s422 = scalar_select %p421, %s25, 1
        %s423 = smul.addr %s422, 2
        %s424 = smul.addr %s423, 8
        %s425 = scalar_lea.vmem %s9, %s424
        %p426 = pneg %p296
        %p427 = pneg %p293
        %p428 = scmp.lt.s32.totalorder %s25, 1
        %s429 = scalar_select %p428, %s25, 1
        %s430 = smul.addr %s429, 8
        %s431 = scalar_lea.vmem %s10, %s430
        %p432 = scmp.lt.s32.totalorder %s25, 1
        %s433 = scalar_select %p432, %s25, 1
        %s434 = smul.addr %s433, 8
        %s435 = scalar_lea.vmem %s0, %s434
        %p436 = scmp.lt.s32.totalorder %s25, 1
        %s437 = scalar_select %p436, %s25, 1
        %s438 = smul.addr %s437, 8
        %s439 = scalar_lea.vmem %s1, %s438
        %p440 = scmp.lt.s32.totalorder %s25, 1
        %s441 = scalar_select %p440, %s25, 1
        %s442 = smul.addr %s441, 8
        %s443 = scalar_lea.vmem %s2, %s442
        %p444 = scmp.lt.s32.totalorder %s25, 1
        %s445 = scalar_select %p444, %s25, 1
        %s446 = smul.addr %s445, 8
        %s447 = scalar_lea.vmem %s3, %s446
        %p448 = scmp.lt.s32.totalorder %s25, 1
        %s449 = scalar_select %p448, %s25, 1
        %s450 = smul.addr %s449, 8
        %s451 = scalar_lea.vmem %s4, %s450
        %p452 = scmp.lt.s32.totalorder %s25, 1
        %s453 = scalar_select %p452, %s25, 1
        %s454 = smul.addr %s453, 2
        %s455 = smul.addr %s454, 8
        %s456 = scalar_lea.vmem %s5, %s455
        %p457 = scmp.lt.s32.totalorder %s25, 1
        %s458 = scalar_select %p457, %s25, 1
        %s459 = smul.addr %s458, 2
        %s460 = smul.addr %s459, 8
        %s461 = scalar_lea.vmem %s9, %s460
        %p462 = scmp.lt.s32.totalorder %s25, 1
        %s463 = scalar_select %p462, %s25, 1
        %s464 = smul.addr %s463, 8
        %s465 = scalar_lea.vmem %s10, %s464
        %v467 = vld [vmem:[%s435] sm:$0xff]
        %469 = vrot.lane.b32.xlu0 %v467, 127
        %v470 = vpop.permute.xlu0 %469
        %v472 = vadd.f32 %v467, %v470
        %v473 = vsub.f32 1.0, %v467
        %475 = vrot.lane.b32.xlu0 %v473, 126
        %v476 = vpop.permute.xlu0 %475
        %v478 = vmul.f32 %v472, %v476
        %479 = vrot.lane.b32.xlu0 %v467, 3
        %v480 = vpop.permute.xlu0 %479
        %v482 = vmul.f32 %v478, %v480
        %484 = vrot.lane.b32.xlu0 %v482, 126
        %v485 = vpop.permute.xlu0 %484
        %v487 = vmul.f32 %v467, %v485
        %v488 = vmul.f32 %v473, %v485
        %v489 = vld [vmem:[%s447] sm:$0xff]
        %v490 = vld [vmem:[%s451] sm:$0xff]
        %492 = vset.pattern.permute.xlu0 1
        %493 = vperm.xlu0 %492, %v487
        %v494 = vpop.permute.xlu0 %493
        %v496 = vmul.f32 %v494, %v489
        %498 = vset.pattern.permute.xlu0 1
        %499 = vperm.xlu0 %498, %v488
        %v500 = vpop.permute.xlu0 %499
        %v502 = vmul.f32 %v500, %v490
        %v503 = vadd.f32 %v496, %v502
        %505 = vrot.lane.b32.xlu0 %v490, 121
        %v506 = vpop.permute.xlu0 %505
        %508 = vrot.lane.b32.xlu0 %v490, 1
        %v509 = vpop.permute.xlu0 %508
        %vm511 = vcmask 7168
        %v512 = vsel %vm511, %v506, %v509
        %v513 = vsub.f32 %v512, %v490
        %v514 = vmul.f32 %v500, %v513
        %v515 = vadd.f32 %v490, %v514
        %vm516 = vcmask 64512
        %517 = vst.msk [vmem:[%s465] sm:$0xff] %vm516, %v515
        %v518 = vld [vmem:[%s439] sm:$0xff]
        %v519 = vld [vmem:[%s443] sm:$0xff]
        %520 = vrot.lane.b32.xlu0 %v467, 126
        %v521 = vpop.permute.xlu0 %520
        %v523 = vadd.f32 %v467, %v521
        %524 = vrot.lane.b32.xlu0 %v467, 2
        %v525 = vpop.permute.xlu0 %524
        %v527 = vmul.f32 %v523, %v525
        %528 = vrot.lane.b32.xlu0 %v473, 4
        %v529 = vpop.permute.xlu0 %528
        %v531 = vmul.f32 %v467, %v529
        %533 = vrot.lane.b32.xlu0 %v531, 127
        %v534 = vpop.permute.xlu0 %533
        %v536 = vadd.f32 %v467, %v534
        %v537 = vmul.f32 %v536, %v525
        %539 = vset.pattern.permute.xlu0 2
        %540 = vperm.xlu0 %539, %v527
        %v541 = vpop.permute.xlu0 %540
        %v543 = vmul.f32 %v541, %v518
        %545 = vset.pattern.permute.xlu0 3
        %546 = vperm.xlu0 %545, %v537
        %v547 = vpop.permute.xlu0 %546
        %v549 = vmul.f32 %v547, %v519
        %v550 = vadd.f32 %v543, %v549
        %vm551 = vcmask 261120
        %552 = vst.msk [vmem:[%s418] sm:$0xff] %vm551, %v550
        %v553 = vld [vmem:[%s6] sm:$0xff]
        %v554 = vpack.c.bf16 %v503, %v503
        %v555 = vunpack.c.l.bf16 %v554
        %v556 = vsub.f32 %v503, %v555
        %v557 = vpack.c.bf16 %v556, %v556
        %v558 = vunpack.c.l.bf16 %v557
        %v559 = vsub.f32 %v556, %v558
        %v560 = vpack.c.bf16 %v559, %v559
        %v562 = vunpack.c.l.b16 %v553
        %v563 = vunpack.c.h.b16 %v553
        %v564 = vpack.c.b16 %v562, %v562
        %v565 = vpack.c.b16 %v563, %v563
        %v567 = vsel %vm516, %v557, 0
        %vm569 = vcmask 1043456
        %v571 = vsel %vm569, %v564, 0
        %v574 = vsel %vm569, %v565, 0
        %576 = vmatprep.subr.bf16.mxu0 0
        %577 = vmatpush1.bf16.msra.mxu0 0
        %578 = vmatprep.subr.bf16.mxu0 0
        %579 = vmatpush1.bf16.msra.mxu0 0
        %580 = vmatprep.subr.bf16.mxu0 0
        %581 = vmatpush1.bf16.msra.mxu0 0
        %582 = vmatprep.subr.bf16.mxu0 0
        %583 = vmatpush1.bf16.msra.mxu0 0
        %584 = vmatprep.subr.bf16.mxu0 0
        %585 = vmatpush1.bf16.msra.mxu0 0
        %586 = vmatprep.subr.bf16.mxu0 0
        %587 = vmatpush1.bf16.msra.mxu0 0
        %588 = vmatprep.subr.bf16.mxu0 0
        %589 = vmatpush1.bf16.msra.mxu0 0
        %590 = vmatprep.subr.bf16.mxu0 %v574
        %591 = vmatpush1.bf16.msra.mxu0 %v571
        %592 = vmatprep.subr.bf16.mxu0 0
        %593 = vmatpush2.bf16.msra.mxu0 0
        %594 = vmatprep.subr.bf16.mxu0 0
        %595 = vmatpush2.bf16.msra.mxu0 0
        %596 = vmatprep.subr.bf16.mxu0 0
        %597 = vmatpush2.bf16.msra.mxu0 0
        %598 = vmatprep.subr.bf16.mxu0 0
        %599 = vmatpush2.bf16.msra.mxu0 0
        %600 = vmatprep.subr.bf16.mxu0 0
        %601 = vmatpush2.bf16.msra.mxu0 0
        %602 = vmatprep.subr.bf16.mxu0 0
        %603 = vmatpush2.bf16.msra.mxu0 0
        %604 = vmatprep.subr.bf16.mxu0 0
        %605 = vmatpush2.bf16.msra.mxu0 0
        %606 = vmatprep.subr.bf16.mxu0 0
        %607 = vmatpush2.bf16.msra.mxu0 0
        %608 = vmatprep.mubr.bf16.mxu0 0
        %609 = vmatmul.mubr.bf16.gmra.mxu0 %v567
        %v610 = vpop.f32.mrf.mxu0
        %v611 = vadd.f32 0.0, %v610
        %v612 = vpop.f32.mrf.mxu0
        %v613 = vadd.f32 0.0, %v612
        %v614 = vpop.f32.mrf.mxu0
        %v615 = vpop.f32.mrf.mxu0
        %616 = vdwg.mxu0
        %v618 = vsel %vm516, %v554, 0
        %620 = vmatprep.subr.bf16.mxu0 0
        %621 = vmatpush1.bf16.msra.mxu0 0
        %622 = vmatprep.subr.bf16.mxu0 0
        %623 = vmatpush1.bf16.msra.mxu0 0
        %624 = vmatprep.subr.bf16.mxu0 0
        %625 = vmatpush1.bf16.msra.mxu0 0
        %626 = vmatprep.subr.bf16.mxu0 0
        %627 = vmatpush1.bf16.msra.mxu0 0
        %628 = vmatprep.subr.bf16.mxu0 0
        %629 = vmatpush1.bf16.msra.mxu0 0
        %630 = vmatprep.subr.bf16.mxu0 0
        %631 = vmatpush1.bf16.msra.mxu0 0
        %632 = vmatprep.subr.bf16.mxu0 0
        %633 = vmatpush1.bf16.msra.mxu0 0
        %634 = vmatprep.subr.bf16.mxu0 %v574
        %635 = vmatpush1.bf16.msra.mxu0 %v571
        %636 = vmatprep.subr.bf16.mxu0 0
        %637 = vmatpush2.bf16.msra.mxu0 0
        %638 = vmatprep.subr.bf16.mxu0 0
        %639 = vmatpush2.bf16.msra.mxu0 0
        %640 = vmatprep.subr.bf16.mxu0 0
        %641 = vmatpush2.bf16.msra.mxu0 0
        %642 = vmatprep.subr.bf16.mxu0 0
        %643 = vmatpush2.bf16.msra.mxu0 0
        %644 = vmatprep.subr.bf16.mxu0 0
        %645 = vmatpush2.bf16.msra.mxu0 0
        %646 = vmatprep.subr.bf16.mxu0 0
        %647 = vmatpush2.bf16.msra.mxu0 0
        %648 = vmatprep.subr.bf16.mxu0 0
        %649 = vmatpush2.bf16.msra.mxu0 0
        %650 = vmatprep.subr.bf16.mxu0 0
        %651 = vmatpush2.bf16.msra.mxu0 0
        %652 = vmatprep.mubr.bf16.mxu0 0
        %653 = vmatmul.mubr.bf16.gmra.mxu0 %v618
        %v654 = vpop.f32.mrf.mxu0
        %v655 = vadd.f32 %v611, %v654
        %v656 = vpop.f32.mrf.mxu0
        %v657 = vadd.f32 %v613, %v656
        %v658 = vpop.f32.mrf.mxu0
        %v659 = vpop.f32.mrf.mxu0
        %660 = vdwg.mxu0
        %v662 = vsel %vm516, %v560, 0
        %664 = vmatprep.subr.bf16.mxu0 0
        %665 = vmatpush1.bf16.msra.mxu0 0
        %666 = vmatprep.subr.bf16.mxu0 0
        %667 = vmatpush1.bf16.msra.mxu0 0
        %668 = vmatprep.subr.bf16.mxu0 0
        %669 = vmatpush1.bf16.msra.mxu0 0
        %670 = vmatprep.subr.bf16.mxu0 0
        %671 = vmatpush1.bf16.msra.mxu0 0
        %672 = vmatprep.subr.bf16.mxu0 0
        %673 = vmatpush1.bf16.msra.mxu0 0
        %674 = vmatprep.subr.bf16.mxu0 0
        %675 = vmatpush1.bf16.msra.mxu0 0
        %676 = vmatprep.subr.bf16.mxu0 0
        %677 = vmatpush1.bf16.msra.mxu0 0
        %678 = vmatprep.subr.bf16.mxu0 %v574
        %679 = vmatpush1.bf16.msra.mxu0 %v571
        %680 = vmatprep.subr.bf16.mxu0 0
        %681 = vmatpush2.bf16.msra.mxu0 0
        %682 = vmatprep.subr.bf16.mxu0 0
        %683 = vmatpush2.bf16.msra.mxu0 0
        %684 = vmatprep.subr.bf16.mxu0 0
        %685 = vmatpush2.bf16.msra.mxu0 0
        %686 = vmatprep.subr.bf16.mxu0 0
        %687 = vmatpush2.bf16.msra.mxu0 0
        %688 = vmatprep.subr.bf16.mxu0 0
        %689 = vmatpush2.bf16.msra.mxu0 0
        %690 = vmatprep.subr.bf16.mxu0 0
        %691 = vmatpush2.bf16.msra.mxu0 0
        %692 = vmatprep.subr.bf16.mxu0 0
        %693 = vmatpush2.bf16.msra.mxu0 0
        %694 = vmatprep.subr.bf16.mxu0 0
        %695 = vmatpush2.bf16.msra.mxu0 0
        %696 = vmatprep.mubr.bf16.mxu0 0
        %697 = vmatmul.mubr.bf16.gmra.mxu0 %v662
        %v698 = vpop.f32.mrf.mxu0
        %v699 = vadd.f32 0.0, %v698
        %v700 = vpop.f32.mrf.mxu0
        %v701 = vadd.f32 0.0, %v700
        %v702 = vpop.f32.mrf.mxu0
        %v703 = vpop.f32.mrf.mxu0
        %704 = vdwg.mxu0
        %v705 = vadd.f32 %v655, %v699
        %v706 = vadd.f32 %v657, %v701
        %v707 = vld [vmem:[%s7] sm:$0xff]
        %v708 = vld [vmem:[%s7 + $0x8] sm:$0xff]
        %v709 = vld [vmem:[%s7 + $0x10] sm:$0xff]
        %v710 = vld [vmem:[%s7 + $0x18] sm:$0xff]
        %v711 = vpack.c.bf16 %v518, %v518
        %v712 = vunpack.c.l.bf16 %v711
        %v713 = vsub.f32 %v518, %v712
        %v714 = vpack.c.bf16 %v713, %v713
        %v715 = vunpack.c.l.bf16 %v714
        %v716 = vsub.f32 %v713, %v715
        %v717 = vpack.c.bf16 %v716, %v716
        %v722 = vunpack.c.l.b16 %v707
        %v723 = vunpack.c.h.b16 %v707
        %v724 = vunpack.c.l.b16 %v708
        %v725 = vunpack.c.h.b16 %v708
        %v726 = vunpack.c.l.b16 %v709
        %v727 = vunpack.c.h.b16 %v709
        %v728 = vunpack.c.l.b16 %v710
        %v729 = vunpack.c.h.b16 %v710
        %v730 = vpack.c.b16 %v724, %v722
        %v731 = vpack.c.b16 %v725, %v723
        %v732 = vpack.c.b16 %v728, %v726
        %v733 = vpack.c.b16 %v729, %v727
        %v739 = vsel %vm551, %v714, 0
        %741 = vmatprep.subr.bf16.mxu0 0
        %742 = vmatpush1.bf16.msra.mxu0 0
        %743 = vmatprep.subr.bf16.mxu0 0
        %744 = vmatpush1.bf16.msra.mxu0 0
        %745 = vmatprep.subr.bf16.mxu0 0
        %746 = vmatpush1.bf16.msra.mxu0 0
        %747 = vmatprep.subr.bf16.mxu0 0
        %748 = vmatpush1.bf16.msra.mxu0 0
        %749 = vmatprep.subr.bf16.mxu0 0
        %750 = vmatpush1.bf16.msra.mxu0 0
        %751 = vmatprep.subr.bf16.mxu0 0
        %752 = vmatpush1.bf16.msra.mxu0 0
        %753 = vmatprep.subr.bf16.mxu0 %v733
        %754 = vmatpush1.bf16.msra.mxu0 %v732
        %755 = vmatprep.subr.bf16.mxu0 %v731
        %756 = vmatpush1.bf16.msra.mxu0 %v730
        %757 = vmatprep.subr.bf16.mxu0 0
        %758 = vmatpush2.bf16.msra.mxu0 0
        %759 = vmatprep.subr.bf16.mxu0 0
        %760 = vmatpush2.bf16.msra.mxu0 0
        %761 = vmatprep.subr.bf16.mxu0 0
        %762 = vmatpush2.bf16.msra.mxu0 0
        %763 = vmatprep.subr.bf16.mxu0 0
        %764 = vmatpush2.bf16.msra.mxu0 0
        %765 = vmatprep.subr.bf16.mxu0 0
        %766 = vmatpush2.bf16.msra.mxu0 0
        %767 = vmatprep.subr.bf16.mxu0 0
        %768 = vmatpush2.bf16.msra.mxu0 0
        %769 = vmatprep.subr.bf16.mxu0 0
        %770 = vmatpush2.bf16.msra.mxu0 0
        %771 = vmatprep.subr.bf16.mxu0 0
        %772 = vmatpush2.bf16.msra.mxu0 0
        %773 = vmatprep.mubr.bf16.mxu0 0
        %774 = vmatmul.mubr.bf16.gmra.mxu0 %v739
        %v775 = vpop.f32.mrf.mxu0
        %v776 = vadd.f32 0.0, %v775
        %v777 = vpop.f32.mrf.mxu0
        %v778 = vadd.f32 0.0, %v777
        %v779 = vpop.f32.mrf.mxu0
        %v780 = vpop.f32.mrf.mxu0
        %781 = vdwg.mxu0
        %v783 = vsel %vm551, %v711, 0
        %785 = vmatprep.subr.bf16.mxu0 0
        %786 = vmatpush1.bf16.msra.mxu0 0
        %787 = vmatprep.subr.bf16.mxu0 0
        %788 = vmatpush1.bf16.msra.mxu0 0
        %789 = vmatprep.subr.bf16.mxu0 0
        %790 = vmatpush1.bf16.msra.mxu0 0
        %791 = vmatprep.subr.bf16.mxu0 0
        %792 = vmatpush1.bf16.msra.mxu0 0
        %793 = vmatprep.subr.bf16.mxu0 0
        %794 = vmatpush1.bf16.msra.mxu0 0
        %795 = vmatprep.subr.bf16.mxu0 0
        %796 = vmatpush1.bf16.msra.mxu0 0
        %797 = vmatprep.subr.bf16.mxu0 %v733
        %798 = vmatpush1.bf16.msra.mxu0 %v732
        %799 = vmatprep.subr.bf16.mxu0 %v731
        %800 = vmatpush1.bf16.msra.mxu0 %v730
        %801 = vmatprep.subr.bf16.mxu0 0
        %802 = vmatpush2.bf16.msra.mxu0 0
        %803 = vmatprep.subr.bf16.mxu0 0
        %804 = vmatpush2.bf16.msra.mxu0 0
        %805 = vmatprep.subr.bf16.mxu0 0
        %806 = vmatpush2.bf16.msra.mxu0 0
        %807 = vmatprep.subr.bf16.mxu0 0
        %808 = vmatpush2.bf16.msra.mxu0 0
        %809 = vmatprep.subr.bf16.mxu0 0
        %810 = vmatpush2.bf16.msra.mxu0 0
        %811 = vmatprep.subr.bf16.mxu0 0
        %812 = vmatpush2.bf16.msra.mxu0 0
        %813 = vmatprep.subr.bf16.mxu0 0
        %814 = vmatpush2.bf16.msra.mxu0 0
        %815 = vmatprep.subr.bf16.mxu0 0
        %816 = vmatpush2.bf16.msra.mxu0 0
        %817 = vmatprep.mubr.bf16.mxu0 0
        %818 = vmatmul.mubr.bf16.gmra.mxu0 %v783
        %v819 = vpop.f32.mrf.mxu0
        %v820 = vadd.f32 %v776, %v819
        %v821 = vpop.f32.mrf.mxu0
        %v822 = vadd.f32 %v778, %v821
        %v823 = vpop.f32.mrf.mxu0
        %v824 = vpop.f32.mrf.mxu0
        %825 = vdwg.mxu0
        %v827 = vsel %vm551, %v717, 0
        %829 = vmatprep.subr.bf16.mxu0 0
        %830 = vmatpush1.bf16.msra.mxu0 0
        %831 = vmatprep.subr.bf16.mxu0 0
        %832 = vmatpush1.bf16.msra.mxu0 0
        %833 = vmatprep.subr.bf16.mxu0 0
        %834 = vmatpush1.bf16.msra.mxu0 0
        %835 = vmatprep.subr.bf16.mxu0 0
        %836 = vmatpush1.bf16.msra.mxu0 0
        %837 = vmatprep.subr.bf16.mxu0 0
        %838 = vmatpush1.bf16.msra.mxu0 0
        %839 = vmatprep.subr.bf16.mxu0 0
        %840 = vmatpush1.bf16.msra.mxu0 0
        %841 = vmatprep.subr.bf16.mxu0 %v733
        %842 = vmatpush1.bf16.msra.mxu0 %v732
        %843 = vmatprep.subr.bf16.mxu0 %v731
        %844 = vmatpush1.bf16.msra.mxu0 %v730
        %845 = vmatprep.subr.bf16.mxu0 0
        %846 = vmatpush2.bf16.msra.mxu0 0
        %847 = vmatprep.subr.bf16.mxu0 0
        %848 = vmatpush2.bf16.msra.mxu0 0
        %849 = vmatprep.subr.bf16.mxu0 0
        %850 = vmatpush2.bf16.msra.mxu0 0
        %851 = vmatprep.subr.bf16.mxu0 0
        %852 = vmatpush2.bf16.msra.mxu0 0
        %853 = vmatprep.subr.bf16.mxu0 0
        %854 = vmatpush2.bf16.msra.mxu0 0
        %855 = vmatprep.subr.bf16.mxu0 0
        %856 = vmatpush2.bf16.msra.mxu0 0
        %857 = vmatprep.subr.bf16.mxu0 0
        %858 = vmatpush2.bf16.msra.mxu0 0
        %859 = vmatprep.subr.bf16.mxu0 0
        %860 = vmatpush2.bf16.msra.mxu0 0
        %861 = vmatprep.mubr.bf16.mxu0 0
        %862 = vmatmul.mubr.bf16.gmra.mxu0 %v827
        %v863 = vpop.f32.mrf.mxu0
        %v864 = vadd.f32 0.0, %v863
        %v865 = vpop.f32.mrf.mxu0
        %v866 = vadd.f32 0.0, %v865
        %v867 = vpop.f32.mrf.mxu0
        %v868 = vpop.f32.mrf.mxu0
        %869 = vdwg.mxu0
        %v870 = vadd.f32 %v820, %v864
        %v871 = vadd.f32 %v822, %v866
        %v872 = vld [vmem:[%s456] sm:$0xff]
        %v873 = vld [vmem:[%s456 + $0x8] sm:$0xff]
        %v874 = vsub.f32 %v870, %v872
        %v875 = vsub.f32 %v871, %v873
        %v876 = vmul.f32 %v705, %v874
        %v877 = vmul.f32 %v706, %v875
        %v878 = vadd.f32 %v872, %v876
        %v879 = vadd.f32 %v873, %v877
        %880 = vst [vmem:[%s461] sm:$0xff] %v878
        %881 = vst [vmem:[%s461 + $0x8] sm:$0xff] %v879
        %s882 = sand.u32 %s231, 1
        %s883 = scalar_lea.sflag [#allocation3], %s882
        %s884 = sand.u32 %s231, 1
        %s885 = smul.addr %s884, 8
        %s886 = scalar_lea.vmem [#allocation2], %s885
        %p887 = scmp.lt.s32.totalorder %s25, 1
        %s888 = scalar_select %p887, %s25, 1
        %s889 = smul.addr %s888, 2
        %s890 = smul.addr %s889, 8
        %s891 = scalar_lea.vmem %s9, %s890
        %p892 = scmp.lt.s32.totalorder %s25, 1
        %s893 = scalar_select %p892, %s25, 1
        %s894 = smul.addr %s893, 8
        %s895 = scalar_lea.vmem %s10, %s894
        // Predicated region
        $region53: #{tpu_custom_call.1} parent=51 // pred_check
          %p896 = pneg %p241
        $region54: #{tpu_custom_call.1} parent=51 // pred_check_branch
          %898 = sbr.rel (%p896) target = $region56
        $region55: #{tpu_custom_call.1} parent=51 // pred_region
          %s900 = ssub.s32 128, 128
          %901 = vsyncadd %s883, %s900
          %s902 = smul.addr %s25, 128
          %s903 = scalar_lea.hbm %s8, %s902
          %s905 = sshll.u32 %s886, 4
          %s906 = int_to_ptr.vmem [resolvable:$true] %s905
          %908 = dma.vmem_to_hbm [thread:$0]  %s906, 128, %s903, %s883
        $region56: #{tpu_custom_call.1} parent=51 // pred_fallthru
          _
        // Predicated region
        $region57: #{tpu_custom_call.1} parent=51 // pred_check
          %p909 = pneg %p267
        $region58: #{tpu_custom_call.1} parent=51 // pred_check_branch
          %911 = sbr.rel (%p909) target = $region60
        $region59: #{tpu_custom_call.1} parent=51 // pred_region
          _
        $region60: #{tpu_custom_call.1} parent=51 // pred_fallthru
          _
        // Predicated region
        $region61: #{tpu_custom_call.1} parent=51 // pred_check
          %p912 = pneg %p293
        $region62: #{tpu_custom_call.1} parent=51 // pred_check_branch
          %914 = sbr.rel (%p912) target = $region64
        $region63: #{tpu_custom_call.1} parent=51 // pred_region
          _
        $region64: #{tpu_custom_call.1} parent=51 // pred_fallthru
          _
      $region52: #{tpu_custom_call.1} parent=5 // pred_fallthru
        _
      %p915 = scmp.le.s32.totalorder 2, %s20
      // Predicated region
      $region65: #{tpu_custom_call.1} parent=5 // pred_check
        %p916 = pneg %p915
      $region66: #{tpu_custom_call.1} parent=5 // pred_check_branch
        %918 = sbr.rel (%p916) target = $region68
      $region67: #{tpu_custom_call.1} parent=5 // pred_region
        %s919 = ssub.s32 %s20, 2
        // Predicated region
        $region69: #{tpu_custom_call.1} parent=67 // pred_check
          %p920 = pneg %p247
        $region70: #{tpu_custom_call.1} parent=67 // pred_check_branch
          %922 = sbr.rel (%p920) target = $region72
        $region71: #{tpu_custom_call.1} parent=67 // pred_region
          %s923 = sand.u32 %s232, 1
          %s924 = scalar_lea.sflag [#allocation3], %s923
          %s925 = sand.u32 %s232, 1
          %s926 = smul.addr %s925, 8
          %s927 = scalar_lea.vmem [#allocation2], %s926
          %928 = dma.done %s924, 128
        $region72: #{tpu_custom_call.1} parent=67 // pred_fallthru
          _
        // Predicated region
        $region73: #{tpu_custom_call.1} parent=67 // pred_check
          %p929 = pneg %p273
        $region74: #{tpu_custom_call.1} parent=67 // pred_check_branch
          %931 = sbr.rel (%p929) target = $region76
        $region75: #{tpu_custom_call.1} parent=67 // pred_region
          %p932 = scmp.lt.s32.totalorder %s26, 1
          %s933 = scalar_select %p932, %s26, 1
          %s934 = smul.addr %s933, 2
          %s935 = smul.addr %s934, 8
          %s936 = scalar_lea.vmem %s9, %s935
        $region76: #{tpu_custom_call.1} parent=67 // pred_fallthru
          _
        // Predicated region
        $region77: #{tpu_custom_call.1} parent=67 // pred_check
          %p937 = pneg %p299
        $region78: #{tpu_custom_call.1} parent=67 // pred_check_branch
          %939 = sbr.rel (%p937) target = $region80
        $region79: #{tpu_custom_call.1} parent=67 // pred_region
          %p940 = scmp.lt.s32.totalorder %s26, 1
          %s941 = scalar_select %p940, %s26, 1
          %s942 = smul.addr %s941, 8
          %s943 = scalar_lea.vmem %s10, %s942
        $region80: #{tpu_custom_call.1} parent=67 // pred_fallthru
          _
      $region68: #{tpu_custom_call.1} parent=5 // pred_fallthru
        _
    $region6: #{tpu_custom_call.1} parent=1 // loop_footer
      %s24 = sadd.s32 1, %s20
    $region7: #{tpu_custom_call.1} parent=1 // loop_footer_branch
      %19 = sbr.rel target = $region3
    $region8: #{tpu_custom_call.1} parent=1 // loop_exit
      _
    %944 = vsyncpa [#allocation3], 1
    %s945 = scalar_lea.sflag [#allocation3], 1
    %946 = vsyncpa %s945, 1

</llo_original>
